<compile_context>
chip_gen: v7x
topology: tpu7x:2x2x1
jax: 0.10.0
libtpu: 0.0.40
codegen_flags: <defaults>
</compile_context>

<pallas_src>
import functools

import jax
import jax.numpy as jnp
from jax.experimental import pallas as pl
from jax.experimental.pallas import tpu as pltpu


def _round_up(x, m):
    return ((x + m - 1) // m) * m


def _rnn_seq_kernel(x_ref, h0_ref, wx_ref, wh_ref, b_ref,
                    out_ref, hid_ref, h_acc, *, H, O):
    """One timestep of the fused RNN recurrence.

    x_ref  : (1, Bp, I)   current input tile
    h0_ref : (Bp, Np)     padded initial hidden (read only at t == 0)
    wx_ref : (I, Np)      fused [W_i2h | W_i2o] rows for the input part
    wh_ref : (Np, Np)     fused [W_i2h | W_i2o] rows for the hidden part
    b_ref  : (1, Np)      fused [b_i2h | b_i2o] (zero padded)
    out_ref: (1, Bp, Np)  per-step log-softmax output (lane-dense)
    hid_ref: (Bp, Np)     final hidden (written only on last step)
    h_acc  : (Bp, Np)     VMEM scratch carrying hidden across timesteps
    """
    t = pl.program_id(0)

    @pl.when(t == 0)
    def _():
        h_acc[...] = h0_ref[...]

    x = x_ref[0]                                # (Bp, I)
    h = h_acc[...]                              # (Bp, Np), only cols < H live

    # Single fused GEMM per operand:  z[:, :H] = hidden', z[:, H:H+O] = logits.
    z = (jnp.dot(x, wx_ref[...], preferred_element_type=jnp.float32)
         + jnp.dot(h, wh_ref[...], preferred_element_type=jnp.float32)
         + b_ref[...])                          # (Bp, Np)

    col = jax.lax.broadcasted_iota(jnp.int32, z.shape, 1)
    hid_mask = col < H
    logit_mask = jnp.logical_and(col >= H, col < H + O)

    # Carry new hidden in VMEM, zeroing the non-hidden lanes.
    new_h = jnp.where(hid_mask, z, 0.0)
    h_acc[...] = new_h

    # Masked log-softmax over the O real logit columns (padding excluded).
    zm = jnp.where(logit_mask, z, jnp.float32(-1e30))
    m = jnp.max(zm, axis=-1, keepdims=True)
    e = jnp.exp(zm - m)
    s = jnp.sum(e, axis=-1, keepdims=True)
    logp = z - (m + jnp.log(s))
    out_ref[0] = jnp.where(logit_mask, logp, 0.0)   # lane-dense full-vreg store

    @pl.when(t == pl.num_programs(0) - 1)
    def _():
        hid_ref[...] = new_h


def fuse_params(input_size, w_i2h, b_i2h, w_i2o, b_i2o):
    """One-time weight prep: transpose, fuse i2h/i2o, split by input rows, pad.

    PyTorch layout in: w_i2h (H, I+H), w_i2o (O, I+H), biases (H,), (O,).
    """
    I = input_size
    H, C = w_i2h.shape
    O = w_i2o.shape[0]
    assert C == I + H
    N = H + O
    Np = max(_round_up(N, 128), 128)            # lane-dense fused output width

    w_h_t = w_i2h.T.astype(jnp.float32)         # (C, H)
    w_o_t = w_i2o.T.astype(jnp.float32)         # (C, O)

    wx = jnp.concatenate([w_h_t[:I], w_o_t[:I]], axis=1)     # (I, N)
    wh = jnp.concatenate([w_h_t[I:], w_o_t[I:]], axis=1)     # (H, N)
    b = jnp.concatenate([b_i2h, b_i2o]).astype(jnp.float32)  # (N,)

    wx_p = jnp.zeros((I, Np), jnp.float32).at[:, :N].set(wx)
    wh_p = jnp.zeros((Np, Np), jnp.float32).at[:H, :N].set(wh)
    b_p = jnp.zeros((1, Np), jnp.float32).at[0, :N].set(b)

    return {"wx": wx_p, "wh": wh_p, "b": b_p,
            "I": I, "H": H, "O": O, "Np": Np}


def rnn_forward_seq(x_seq, hidden0, params):
    """Run the RNN cell over a whole sequence in a single fused pallas_call.

    x_seq: (T, B, I), hidden0: (B, H).
    Returns (log_softmax outputs (T, B, O), final hidden (B, H)).
    """
    T, B, I = x_seq.shape
    H, O, Np = params["H"], params["O"], params["Np"]
    assert I == params["I"]

    Bp = _round_up(B, 8)                        # sublane-pad the batch

    x_p = jnp.zeros((T, Bp, I), jnp.float32).at[:, :B, :].set(x_seq)
    h0_p = jnp.zeros((Bp, Np), jnp.float32).at[:B, :H].set(hidden0)

    kernel = functools.partial(_rnn_seq_kernel, H=H, O=O)

    out_p, hid_p = pl.pallas_call(
        kernel,
        out_shape=(
            jax.ShapeDtypeStruct((T, Bp, Np), jnp.float32),   # per-step log-probs
            jax.ShapeDtypeStruct((Bp, Np), jnp.float32),      # final hidden
        ),
        grid_spec=pltpu.PrefetchScalarGridSpec(
            num_scalar_prefetch=0,
            grid=(T,),
            in_specs=[
                pl.BlockSpec((1, Bp, I), lambda t: (t, 0, 0)),   # x_t (per step)
                pl.BlockSpec((Bp, Np), lambda t: (0, 0)),        # h0 (resident)
                pl.BlockSpec((I, Np), lambda t: (0, 0)),         # Wx (resident)
                pl.BlockSpec((Np, Np), lambda t: (0, 0)),        # Wh (resident)
                pl.BlockSpec((1, Np), lambda t: (0, 0)),         # bias (resident)
            ],
            out_specs=[
                pl.BlockSpec((1, Bp, Np), lambda t: (t, 0, 0)),  # per-step output
                pl.BlockSpec((Bp, Np), lambda t: (0, 0)),        # final hidden
            ],
            scratch_shapes=[pltpu.VMEM((Bp, Np), jnp.float32)],  # carried hidden
        ),
        compiler_params=pltpu.CompilerParams(
            dimension_semantics=("arbitrary",)),                 # recurrence axis
    )(x_p, h0_p, params["wx"], params["wh"], params["b"])

    out = out_p[:, :B, H:H + O]      # (T, B, O) log-softmax
    hid = hid_p[:B, :H]              # (B, H) final hidden
    return out, hid


def rnn_forward(inp, hidden, params):
    """Single-step forward matching the original PyTorch module's signature."""
    out, hid = rnn_forward_seq(inp[None], hidden, params)
    return out[0], hid


def _reference_step(inp, hidden, w_i2h, b_i2h, w_i2o, b_i2o):
    combined = jnp.concatenate([inp, hidden], axis=1)
    hid = combined @ w_i2h.T + b_i2h
    logits = combined @ w_i2o.T + b_i2o
    return jax.nn.log_softmax(logits, axis=1), hid


if __name__ == "__main__":
    input_size, hidden_size, output_size = 16, 32, 8
    batch, seq_len = 2, 8

    key = jax.random.PRNGKey(0)
    k1, k2, k3, k4, k5 = jax.random.split(key, 5)

    # PyTorch nn.Linear init: U(-1/sqrt(fan_in), 1/sqrt(fan_in))
    fan_in = input_size + hidden_size
    bound = 1.0 / (fan_in ** 0.5)
    w_i2h = jax.random.uniform(k1, (hidden_size, fan_in), jnp.float32, -bound, bound)
    b_i2h = jax.random.uniform(k2, (hidden_size,), jnp.float32, -bound, bound)
    w_i2o = jax.random.uniform(k3, (output_size, fan_in), jnp.float32, -bound, bound)
    b_i2o = jax.random.uniform(k4, (output_size,), jnp.float32, -bound, bound)

    x_seq = jax.random.normal(k5, (seq_len, batch, input_size), jnp.float32)
    hidden0 = jnp.zeros((batch, hidden_size), jnp.float32)   # init_hidden()

    # One-time weight fusion / padding (hoisted out of the forward path).
    params = fuse_params(input_size, w_i2h, b_i2h, w_i2o, b_i2o)

    # Fused full-sequence forward (one pallas_call for all timesteps).
    out_seq, hid_final = rnn_forward_seq(x_seq, hidden0, params)
    out_seq, hid_final = jax.block_until_ready((out_seq, hid_final))

    # Reference: unfused step-by-step PyTorch-equivalent loop.
    ref_h = hidden0
    ref_outs = []
    for t in range(seq_len):
        ref_o, ref_h = _reference_step(x_seq[t], ref_h,
                                       w_i2h, b_i2h, w_i2o, b_i2o)
        ref_outs.append(ref_o)
    ref_outs = jnp.stack(ref_outs)

    assert out_seq.shape == (seq_len, batch, output_size)
    assert hid_final.shape == (batch, hidden_size)
    assert jnp.allclose(out_seq, ref_outs, atol=1e-4), "sequence log_softmax mismatch"
    assert jnp.allclose(hid_final, ref_h, atol=1e-4), "final hidden mismatch"

    # Single-step path (original forward(input, hidden) semantics).
    out1, hid1 = rnn_forward(x_seq[0], hidden0, params)
    out1, hid1 = jax.block_until_ready((out1, hid1))
    ref_o1, ref_h1 = _reference_step(x_seq[0], hidden0,
                                     w_i2h, b_i2h, w_i2o, b_i2o)
    assert jnp.allclose(out1, ref_o1, atol=1e-4), "single-step output mismatch"
    assert jnp.allclose(hid1, ref_h1, atol=1e-4), "single-step hidden mismatch"

    print("KERNEL_OK")
</pallas_src>

<mosaic_0001>
module attributes {stable_mosaic.version = 11 : i64} {
  func.func @_rnn_seq_kernel(%arg0: i32, %arg1: memref<1x8x16xf32, #tpu.memory_space<vmem>>, %arg2: memref<8x128xf32, #tpu.memory_space<vmem>>, %arg3: memref<16x128xf32, #tpu.memory_space<vmem>>, %arg4: memref<128x128xf32, #tpu.memory_space<vmem>>, %arg5: memref<1x128xf32, #tpu.memory_space<vmem>>, %arg6: memref<1x8x128xf32, #tpu.memory_space<vmem>>, %arg7: memref<8x128xf32, #tpu.memory_space<vmem>>, %arg8: memref<8x128xf32, #tpu.memory_space<vmem>>) attributes {dimension_semantics = [#tpu.dimension_semantics<arbitrary>], iteration_bounds = array<i64: 8>, scalar_prefetch = 0 : i64, scratch_operands = 1 : i64, tpu.core_type = #tpu.core_type<tc>, window_params = [{transform_indices = @transform_0, window_bounds = array<i64: 1, 8, 16>}, {pipeline_mode = #tpu.pipeline_mode<synchronous>, transform_indices = @transform_1, window_bounds = array<i64: 8, 128>}, {pipeline_mode = #tpu.pipeline_mode<synchronous>, transform_indices = @transform_2, window_bounds = array<i64: 16, 128>}, {pipeline_mode = #tpu.pipeline_mode<synchronous>, transform_indices = @transform_3, window_bounds = array<i64: 128, 128>}, {pipeline_mode = #tpu.pipeline_mode<synchronous>, transform_indices = @transform_4, window_bounds = array<i64: 1, 128>}, {transform_indices = @transform_5, window_bounds = array<i64: 1, 8, 128>}, {pipeline_mode = #tpu.pipeline_mode<synchronous>, transform_indices = @transform_6, window_bounds = array<i64: 8, 128>}]} {
    %c0_i32 = arith.constant 0 : i32
    %0 = arith.cmpi eq, %arg0, %c0_i32 : i32
    %1 = arith.extui %0 : i1 to i32
    %c0_i32_0 = arith.constant 0 : i32
    %2 = arith.cmpi ne, %1, %c0_i32_0 : i32
    scf.if %2 {
      %c0_24 = arith.constant 0 : index
      %c0_25 = arith.constant 0 : index
      %46 = vector.load %arg2[%c0_24, %c0_25] : memref<8x128xf32, #tpu.memory_space<vmem>>, vector<8x128xf32>
      %c0_26 = arith.constant 0 : index
      %c0_27 = arith.constant 0 : index
      %47 = vector.load %arg8[%c0_26, %c0_27] : memref<8x128xf32, #tpu.memory_space<vmem>>, vector<8x128xf32>
      tpu.vector_store %arg8[%c0_26, %c0_27], %46 {strides = array<i32>} : memref<8x128xf32, #tpu.memory_space<vmem>>, vector<8x128xf32>,
    } else {
    }
    %c0 = arith.constant 0 : index
    %c0_1 = arith.constant 0 : index
    %c0_2 = arith.constant 0 : index
    %3 = vector.load %arg1[%c0, %c0_1, %c0_2] : memref<1x8x16xf32, #tpu.memory_space<vmem>>, vector<1x8x16xf32>
    %4 = vector.shape_cast %3 : vector<1x8x16xf32> to vector<8x16xf32>
    %c0_3 = arith.constant 0 : index
    %c0_4 = arith.constant 0 : index
    %5 = vector.load %arg8[%c0_3, %c0_4] : memref<8x128xf32, #tpu.memory_space<vmem>>, vector<8x128xf32>
    %c0_5 = arith.constant 0 : index
    %c0_6 = arith.constant 0 : index
    %6 = vector.load %arg3[%c0_5, %c0_6] : memref<16x128xf32, #tpu.memory_space<vmem>>, vector<16x128xf32>
    %cst = arith.constant dense<0.000000e+00> : vector<8x128xf32>
    %7 = tpu.matmul %4, %6, %cst {dimension_numbers = #tpu.dot_dimension_numbers<[1], [0], [0], [1], [0, 0, 1, 1], [], []>} : vector<8x16xf32>, vector<16x128xf32>, vector<8x128xf32> -> vector<8x128xf32>
    %c0_7 = arith.constant 0 : index
    %c0_8 = arith.constant 0 : index
    %8 = vector.load %arg4[%c0_7, %c0_8] : memref<128x128xf32, #tpu.memory_space<vmem>>, vector<128x128xf32>
    %cst_9 = arith.constant dense<0.000000e+00> : vector<8x128xf32>
    %9 = tpu.matmul %5, %8, %cst_9 {dimension_numbers = #tpu.dot_dimension_numbers<[1], [0], [0], [1], [0, 0, 1, 1], [], []>} : vector<8x128xf32>, vector<128x128xf32>, vector<8x128xf32> -> vector<8x128xf32>
    %10 = arith.addf %7, %9 : vector<8x128xf32>
    %c0_10 = arith.constant 0 : index
    %c0_11 = arith.constant 0 : index
    %11 = vector.load %arg5[%c0_10, %c0_11] : memref<1x128xf32, #tpu.memory_space<vmem>>, vector<1x128xf32>
    %12 = vector.broadcast %11 : vector<1x128xf32> to vector<8x128xf32>
    %13 = arith.addf %10, %12 : vector<8x128xf32>
    %14 = tpu.iota {dimensions = array<i32: 1>} : vector<8x128xi32>
    %c32_i32 = arith.constant 32 : i32
    %15 = vector.broadcast %c32_i32 : i32 to vector<8x128xi32>
    %16 = arith.cmpi slt, %14, %15 : vector<8x128xi32>
    %c32_i32_12 = arith.constant 32 : i32
    %17 = vector.broadcast %c32_i32_12 : i32 to vector<8x128xi32>
    %18 = arith.cmpi sge, %14, %17 : vector<8x128xi32>
    %c40_i32 = arith.constant 40 : i32
    %19 = vector.broadcast %c40_i32 : i32 to vector<8x128xi32>
    %20 = arith.cmpi slt, %14, %19 : vector<8x128xi32>
    %21 = arith.andi %18, %20 : vector<8x128xi1>
    %cst_13 = arith.constant 0.000000e+00 : f32
    %22 = vector.broadcast %cst_13 : f32 to vector<8x128xf32>
    %23 = arith.select %16, %13, %22 : vector<8x128xi1>, vector<8x128xf32>
    %c0_14 = arith.constant 0 : index
    %c0_15 = arith.constant 0 : index
    %24 = vector.load %arg8[%c0_14, %c0_15] : memref<8x128xf32, #tpu.memory_space<vmem>>, vector<8x128xf32>
    tpu.vector_store %arg8[%c0_14, %c0_15], %23 {strides = array<i32>} : memref<8x128xf32, #tpu.memory_space<vmem>>, vector<8x128xf32>,
    %cst_16 = arith.constant -1.000000e+30 : f32
    %25 = vector.broadcast %cst_16 : f32 to vector<8x128xf32>
    %26 = arith.select %21, %13, %25 : vector<8x128xi1>, vector<8x128xf32>
    %cst_17 = arith.constant dense<0xFF800000> : vector<8xf32>
    %27 = vector.multi_reduction <maximumf>, %26, %cst_17 [1] : vector<8x128xf32> to vector<8xf32>
    %28 = vector.shape_cast %27 : vector<8xf32> to vector<8x1xf32>
    %29 = vector.broadcast %28 : vector<8x1xf32> to vector<8x128xf32>
    %30 = arith.subf %26, %29 : vector<8x128xf32>
    %31 = math.exp %30 : vector<8x128xf32>
    %cst_18 = arith.constant dense<0.000000e+00> : vector<8xf32>
    %32 = vector.multi_reduction <add>, %31, %cst_18 [1] : vector<8x128xf32> to vector<8xf32>
    %33 = vector.shape_cast %32 : vector<8xf32> to vector<8x1xf32>
    %34 = math.log %33 : vector<8x1xf32>
    %35 = arith.addf %28, %34 : vector<8x1xf32>
    %36 = vector.broadcast %35 : vector<8x1xf32> to vector<8x128xf32>
    %37 = arith.subf %13, %36 : vector<8x128xf32>
    %cst_19 = arith.constant 0.000000e+00 : f32
    %38 = vector.broadcast %cst_19 : f32 to vector<8x128xf32>
    %39 = arith.select %21, %37, %38 : vector<8x128xi1>, vector<8x128xf32>
    %c0_20 = arith.constant 0 : index
    %c0_21 = arith.constant 0 : index
    %c0_22 = arith.constant 0 : index
    %40 = vector.load %arg6[%c0_20, %c0_21, %c0_22] : memref<1x8x128xf32, #tpu.memory_space<vmem>>, vector<1x8x128xf32>
    %41 = vector.shape_cast %40 : vector<1x8x128xf32> to vector<8x128xf32>
    %42 = vector.shape_cast %39 : vector<8x128xf32> to vector<1x8x128xf32>
    tpu.vector_store %arg6[%c0_20, %c0_21, %c0_22], %42 {strides = array<i32>} : memref<1x8x128xf32, #tpu.memory_space<vmem>>, vector<1x8x128xf32>,
    %c7_i32 = arith.constant 7 : i32
    %43 = arith.cmpi eq, %arg0, %c7_i32 : i32
    %44 = arith.extui %43 : i1 to i32
    %c0_i32_23 = arith.constant 0 : i32
    %45 = arith.cmpi ne, %44, %c0_i32_23 : i32
    scf.if %45 {
      %c0_24 = arith.constant 0 : index
      %c0_25 = arith.constant 0 : index
      %46 = vector.load %arg7[%c0_24, %c0_25] : memref<8x128xf32, #tpu.memory_space<vmem>>, vector<8x128xf32>
      tpu.vector_store %arg7[%c0_24, %c0_25], %23 {strides = array<i32>} : memref<8x128xf32, #tpu.memory_space<vmem>>, vector<8x128xf32>,
    } else {
    }
    return
  }
  func.func @transform_0(%arg0: i32) -> (i32, i32, i32) {
    %c0_i32 = arith.constant 0 : i32
    %c0_i32_0 = arith.constant 0 : i32
    %c0_i32_1 = arith.constant 0 : i32
    return %arg0, %c0_i32, %c0_i32_0 : i32, i32, i32
  }
  func.func @transform_1(%arg0: i32) -> (i32, i32) {
    %c0_i32 = arith.constant 0 : i32
    %c0_i32_0 = arith.constant 0 : i32
    %c0_i32_1 = arith.constant 0 : i32
    return %c0_i32, %c0_i32_0 : i32, i32
  }
  func.func @transform_2(%arg0: i32) -> (i32, i32) {
    %c0_i32 = arith.constant 0 : i32
    %c0_i32_0 = arith.constant 0 : i32
    %c0_i32_1 = arith.constant 0 : i32
    return %c0_i32, %c0_i32_0 : i32, i32
  }
  func.func @transform_3(%arg0: i32) -> (i32, i32) {
    %c0_i32 = arith.constant 0 : i32
    %c0_i32_0 = arith.constant 0 : i32
    %c0_i32_1 = arith.constant 0 : i32
    return %c0_i32, %c0_i32_0 : i32, i32
  }
  func.func @transform_4(%arg0: i32) -> (i32, i32) {
    %c0_i32 = arith.constant 0 : i32
    %c0_i32_0 = arith.constant 0 : i32
    %c0_i32_1 = arith.constant 0 : i32
    return %c0_i32, %c0_i32_0 : i32, i32
  }
  func.func @transform_5(%arg0: i32) -> (i32, i32, i32) {
    %c0_i32 = arith.constant 0 : i32
    %c0_i32_0 = arith.constant 0 : i32
    %c0_i32_1 = arith.constant 0 : i32
    return %arg0, %c0_i32, %c0_i32_0 : i32, i32, i32
  }
  func.func @transform_6(%arg0: i32) -> (i32, i32) {
    %c0_i32 = arith.constant 0 : i32
    %c0_i32_0 = arith.constant 0 : i32
    %c0_i32_1 = arith.constant 0 : i32
    return %c0_i32, %c0_i32_0 : i32, i32
  }
}

</mosaic_0001>

<llo_original>
// kernel: tpu_custom_call.1
$region0: #{tpu_custom_call.1}
  #allocation0 [shape = 'u32[]', space=smem, size = 0x4, offset = 0x4, fixed_abs, tag = 'smem constant byte address 0x4 - core index']
  #allocation1 [shape = 'u32[144,128]{1,0:T(1,128)}', space=vmem, size = 0x12000, scoped, tag = 'internal scratch']
  #allocation2 [shape = 'f32[8,128]{1,0:T(8,128)}', space=vmem, size = 0x1000, scoped, tag = 'scratch operand']
  %s0 = inlined_call_operand.hbm [shape: f32[8,8,16], index: 0, kind: input, shape index: {}]
  %s1 = inlined_call_operand.hbm [shape: f32[8,128], index: 1, kind: input, shape index: {}]
  %s2 = inlined_call_operand.hbm [shape: f32[16,128], index: 2, kind: input, shape index: {}]
  %s3 = inlined_call_operand.hbm [shape: f32[128,128], index: 3, kind: input, shape index: {}]
  %s4 = inlined_call_operand.vmem [shape: f32[1,128], index: 4, kind: input, shape index: {}]
  %s5 = inlined_call_operand.hbm [shape: f32[8,8,128], index: 5, kind: output, shape index: {0}]
  %s6 = inlined_call_operand.hbm [shape: f32[8,128], index: 6, kind: output, shape index: {1}]
  %7 = xla_tuple %s5, %s6
  %s8 = sld [smem:[#allocation0]]
  $region85: #{tpu_custom_call.1} parent=0
    _
  %s10 = ssub.s32 1, %s8
  %s11 = scalar_select 0, %s10, %s8
  $region1: #{tpu_custom_call.1} parent=0
    #allocation3 [shape = 'u8[8192]{0}', space=vmem, size = 0x2000, scoped, tag = 'input window, operand 0']
    #allocation4 [shape = 's32[2]{0}', space=sflag, size = 0x8, scoped, tag = 'scoped memory for tpu_custom_call.1']
    #allocation5 [shape = 's32[2]{0}', space=sflag, size = 0x8, scoped, tag = 'scoped memory for tpu_custom_call.1']
    #allocation6 [shape = 'u8[4096]{0}', space=vmem, size = 0x1000, scoped, tag = 'input window, operand 1, single buffered']
    #allocation7 [shape = 's32[1]{0}', space=sflag, size = 0x4, scoped, tag = 'scoped memory for tpu_custom_call.1']
    #allocation8 [shape = 'u8[8192]{0}', space=vmem, size = 0x2000, scoped, tag = 'input window, operand 2, single buffered']
    #allocation9 [shape = 'u8[65536]{0}', space=vmem, size = 0x10000, scoped, tag = 'input window, operand 3, single buffered']
    #allocation10 [shape = 's32[1]{0}', space=sflag, size = 0x4, scoped, tag = 'scoped memory for tpu_custom_call.1']
    #allocation11 [shape = 'u8[8192]{0}', space=vmem, size = 0x2000, scoped, tag = 'output window, operand 0']
    #allocation12 [shape = 'u8[4096]{0}', space=vmem, size = 0x1000, scoped, tag = 'output window, operand 1, single buffered']
    #allocation13 [shape = 's32[1]{0}', space=sflag, size = 0x4, scoped, tag = 'scoped memory for tpu_custom_call.1']
    %12 = vsyncpa [#allocation4], 0
    %s13 = scalar_lea.sflag [#allocation4], 1
    %14 = vsyncpa %s13, 0
    %15 = vsyncpa [#allocation7], 0
    %16 = vsyncpa [#allocation10], 0
    %17 = vsyncpa [#allocation5], 0
    %s18 = scalar_lea.sflag [#allocation5], 1
    %19 = vsyncpa %s18, 0
    %20 = vsyncpa [#allocation13], 0
    loop: start=0, step=1, limit=10
    $region2: #{tpu_custom_call.1} parent=1 // loop_pre_header
      _
    $region3: #{tpu_custom_call.1} parent=1 // loop_header
      %s22 = sphi 0, %s26
      %p23 = scmp.ge.s32.totalorder %s22, 10
      %s32 = sphi 0, %s34
      %s35 = sphi 0, %s32
      %s36 = sphi 0, %s35
      %s52 = sphi 0, %s36
      %s56 = sphi 0, %s56
      %s58 = sphi 0, %s56
      %s59 = sphi 0, %s58
      %s73 = sphi 0, %s59
      %s77 = sphi 0, %s77
      %s79 = sphi 0, %s77
      %s80 = sphi 0, %s79
      %s94 = sphi 0, %s80
      %s98 = sphi 0, %s98
      %s100 = sphi 0, %s98
      %s101 = sphi 0, %s100
      %s115 = sphi 0, %s101
      %s119 = sphi 0, %s119
      %s121 = sphi 0, %s119
      %s122 = sphi 0, %s121
      %s136 = sphi 0, %s122
      %s142 = sphi 0, %s144
      %s145 = sphi 0, %s142
      %s146 = sphi 0, %s145
      %s162 = sphi 0, %s146
      %s166 = sphi 0, %s166
      %s168 = sphi 0, %s166
      %s169 = sphi 0, %s168
      %s183 = sphi 0, %s169
    $region4: #{tpu_custom_call.1} parent=1 // loop_header_branch
      %25 = sbr.rel (%p23) target = $region8
    $region5: #{tpu_custom_call.1} parent=1 // loop_body
      %s27 = ssub.s32 %s22, 1
      %s28 = ssub.s32 %s22, 2
      %s29 = sadd.s32 %s22, 1
      %s30 = ssub.s32 %s22, %s29
      %p31 = scmp.eq.s32.totalorder %s30, 0
      %s33 = sadd.s32 %s32, 1
      %s34 = scalar_select %p31, %s32, %s33
      %p37 = pneg %p31
      %p38 = scmp.eq.s32.totalorder %s22, 7
      %p39 = por %p37, %p38
      %p40 = scmp.ne.s32.totalorder %s32, %s35
      %p41 = scmp.eq.s32.totalorder %s22, 0
      %p42 = por %p40, %p41
      %p43 = scmp.ne.s32.totalorder %s32, %s35
      %p44 = scmp.eq.s32.totalorder %s27, 7
      %p45 = por %p43, %p44
      %p46 = scmp.ne.s32.totalorder %s35, %s36
      %p47 = scmp.eq.s32.totalorder %s27, 0
      %p48 = por %p46, %p47
      %p49 = scmp.ne.s32.totalorder %s35, %s36
      %p50 = scmp.eq.s32.totalorder %s28, 7
      %p51 = por %p49, %p50
      %p53 = scmp.ne.s32.totalorder %s36, %s52
      %p54 = scmp.eq.s32.totalorder %s28, 0
      %p55 = por %p53, %p54
      %s57 = sadd.s32 %s56, 1
      %p60 = scmp.eq.s32.totalorder %s22, 7
      %p61 = scmp.ne.s32.totalorder %s56, %s58
      %p62 = scmp.eq.s32.totalorder %s22, 0
      %p63 = por %p61, %p62
      %p64 = scmp.ne.s32.totalorder %s56, %s58
      %p65 = scmp.eq.s32.totalorder %s27, 7
      %p66 = por %p64, %p65
      %p67 = scmp.ne.s32.totalorder %s58, %s59
      %p68 = scmp.eq.s32.totalorder %s27, 0
      %p69 = por %p67, %p68
      %p70 = scmp.ne.s32.totalorder %s58, %s59
      %p71 = scmp.eq.s32.totalorder %s28, 7
      %p72 = por %p70, %p71
      %p74 = scmp.ne.s32.totalorder %s59, %s73
      %p75 = scmp.eq.s32.totalorder %s28, 0
      %p76 = por %p74, %p75
      %s78 = sadd.s32 %s77, 1
      %p81 = scmp.eq.s32.totalorder %s22, 7
      %p82 = scmp.ne.s32.totalorder %s77, %s79
      %p83 = scmp.eq.s32.totalorder %s22, 0
      %p84 = por %p82, %p83
      %p85 = scmp.ne.s32.totalorder %s77, %s79
      %p86 = scmp.eq.s32.totalorder %s27, 7
      %p87 = por %p85, %p86
      %p88 = scmp.ne.s32.totalorder %s79, %s80
      %p89 = scmp.eq.s32.totalorder %s27, 0
      %p90 = por %p88, %p89
      %p91 = scmp.ne.s32.totalorder %s79, %s80
      %p92 = scmp.eq.s32.totalorder %s28, 7
      %p93 = por %p91, %p92
      %p95 = scmp.ne.s32.totalorder %s80, %s94
      %p96 = scmp.eq.s32.totalorder %s28, 0
      %p97 = por %p95, %p96
      %s99 = sadd.s32 %s98, 1
      %p102 = scmp.eq.s32.totalorder %s22, 7
      %p103 = scmp.ne.s32.totalorder %s98, %s100
      %p104 = scmp.eq.s32.totalorder %s22, 0
      %p105 = por %p103, %p104
      %p106 = scmp.ne.s32.totalorder %s98, %s100
      %p107 = scmp.eq.s32.totalorder %s27, 7
      %p108 = por %p106, %p107
      %p109 = scmp.ne.s32.totalorder %s100, %s101
      %p110 = scmp.eq.s32.totalorder %s27, 0
      %p111 = por %p109, %p110
      %p112 = scmp.ne.s32.totalorder %s100, %s101
      %p113 = scmp.eq.s32.totalorder %s28, 7
      %p114 = por %p112, %p113
      %p116 = scmp.ne.s32.totalorder %s101, %s115
      %p117 = scmp.eq.s32.totalorder %s28, 0
      %p118 = por %p116, %p117
      %s120 = sadd.s32 %s119, 1
      %p123 = scmp.eq.s32.totalorder %s22, 7
      %p124 = scmp.ne.s32.totalorder %s119, %s121
      %p125 = scmp.eq.s32.totalorder %s22, 0
      %p126 = por %p124, %p125
      %p127 = scmp.ne.s32.totalorder %s119, %s121
      %p128 = scmp.eq.s32.totalorder %s27, 7
      %p129 = por %p127, %p128
      %p130 = scmp.ne.s32.totalorder %s121, %s122
      %p131 = scmp.eq.s32.totalorder %s27, 0
      %p132 = por %p130, %p131
      %p133 = scmp.ne.s32.totalorder %s121, %s122
      %p134 = scmp.eq.s32.totalorder %s28, 7
      %p135 = por %p133, %p134
      %p137 = scmp.ne.s32.totalorder %s122, %s136
      %p138 = scmp.eq.s32.totalorder %s28, 0
      %p139 = por %p137, %p138
      %s140 = ssub.s32 %s22, %s29
      %p141 = scmp.eq.s32.totalorder %s140, 0
      %s143 = sadd.s32 %s142, 1
      %s144 = scalar_select %p141, %s142, %s143
      %p147 = pneg %p141
      %p148 = scmp.eq.s32.totalorder %s22, 7
      %p149 = por %p147, %p148
      %p150 = scmp.ne.s32.totalorder %s142, %s145
      %p151 = scmp.eq.s32.totalorder %s22, 0
      %p152 = por %p150, %p151
      %p153 = scmp.ne.s32.totalorder %s142, %s145
      %p154 = scmp.eq.s32.totalorder %s27, 7
      %p155 = por %p153, %p154
      %p156 = scmp.ne.s32.totalorder %s145, %s146
      %p157 = scmp.eq.s32.totalorder %s27, 0
      %p158 = por %p156, %p157
      %p159 = scmp.ne.s32.totalorder %s145, %s146
      %p160 = scmp.eq.s32.totalorder %s28, 7
      %p161 = por %p159, %p160
      %p163 = scmp.ne.s32.totalorder %s146, %s162
      %p164 = scmp.eq.s32.totalorder %s28, 0
      %p165 = por %p163, %p164
      %s167 = sadd.s32 %s166, 1
      %p170 = scmp.eq.s32.totalorder %s22, 7
      %p171 = scmp.ne.s32.totalorder %s166, %s168
      %p172 = scmp.eq.s32.totalorder %s22, 0
      %p173 = por %p171, %p172
      %p174 = scmp.ne.s32.totalorder %s166, %s168
      %p175 = scmp.eq.s32.totalorder %s27, 7
      %p176 = por %p174, %p175
      %p177 = scmp.ne.s32.totalorder %s168, %s169
      %p178 = scmp.eq.s32.totalorder %s27, 0
      %p179 = por %p177, %p178
      %p180 = scmp.ne.s32.totalorder %s168, %s169
      %p181 = scmp.eq.s32.totalorder %s28, 7
      %p182 = por %p180, %p181
      %p184 = scmp.ne.s32.totalorder %s169, %s183
      %p185 = scmp.eq.s32.totalorder %s28, 0
      %p186 = por %p184, %p185
      %p187 = scmp.le.s32.totalorder 1, %s22
      %p188 = scmp.lt.s32.totalorder %s22, 9
      %p189 = pnand %p187, %p188
      %p190 = pneg %p189
      // Predicated region
      $region9: #{tpu_custom_call.1} parent=5 // pred_check
        _
      $region10: #{tpu_custom_call.1} parent=5 // pred_check_branch
        %192 = sbr.rel (%p189) target = $region12
      $region11: #{tpu_custom_call.1} parent=5 // pred_region
        %s193 = ssub.s32 %s22, 1
        // Predicated region
        $region13: #{tpu_custom_call.1} parent=11 // pred_check
          %p194 = pneg %p69
        $region14: #{tpu_custom_call.1} parent=11 // pred_check_branch
          %196 = sbr.rel (%p194) target = $region16
        $region15: #{tpu_custom_call.1} parent=11 // pred_region
          %s198 = ssub.s32 128, 128
          %199 = vsyncadd [#allocation7], %s198
          %s201 = sshll.u32 [#allocation6], 4
          %s202 = int_to_ptr.vmem [resolvable:$true] %s201
          %204 = dma.hbm_to_vmem [thread:$0]  %s1, 128, %s202, [#allocation7]
        $region16: #{tpu_custom_call.1} parent=11 // pred_fallthru
          _
        // Predicated region
        $region17: #{tpu_custom_call.1} parent=11 // pred_check
          %p205 = pneg %p90
        $region18: #{tpu_custom_call.1} parent=11 // pred_check_branch
          %207 = sbr.rel (%p205) target = $region20
        $region19: #{tpu_custom_call.1} parent=11 // pred_region
          %s209 = ssub.s32 256, 256
          %210 = vsyncadd [#allocation7], %s209
          %s211 = sshll.u32 [#allocation8], 4
          %s212 = int_to_ptr.vmem [resolvable:$true] %s211
          %217 = dma.hbm_to_vmem [thread:$0]  %s2, 256, %s212, [#allocation7], 128, 128, 8
        $region20: #{tpu_custom_call.1} parent=11 // pred_fallthru
          _
        // Predicated region
        $region21: #{tpu_custom_call.1} parent=11 // pred_check
          %p218 = pneg %p111
        $region22: #{tpu_custom_call.1} parent=11 // pred_check_branch
          %220 = sbr.rel (%p218) target = $region24
        $region23: #{tpu_custom_call.1} parent=11 // pred_region
          %s222 = ssub.s32 2048, 2048
          %223 = vsyncadd [#allocation10], %s222
          %s224 = sshll.u32 [#allocation9], 4
          %s225 = int_to_ptr.vmem [resolvable:$true] %s224
          %230 = dma.hbm_to_vmem [thread:$0]  %s3, 2048, %s225, [#allocation10], 128, 128, 8
        $region24: #{tpu_custom_call.1} parent=11 // pred_fallthru
          _
        // Predicated region
        $region25: #{tpu_custom_call.1} parent=11 // pred_check
          %p231 = pneg %p132
        $region26: #{tpu_custom_call.1} parent=11 // pred_check_branch
          %233 = sbr.rel (%p231) target = $region28
        $region27: #{tpu_custom_call.1} parent=11 // pred_region
          _
        $region28: #{tpu_custom_call.1} parent=11 // pred_fallthru
          _
      $region12: #{tpu_custom_call.1} parent=5 // pred_fallthru
        _
      %p234 = scmp.lt.s32.totalorder %s22, 8
      // Predicated region
      $region29: #{tpu_custom_call.1} parent=5 // pred_check
        %p235 = pneg %p234
      $region30: #{tpu_custom_call.1} parent=5 // pred_check_branch
        %237 = sbr.rel (%p235) target = $region32
      $region31: #{tpu_custom_call.1} parent=5 // pred_region
        // Predicated region
        $region33: #{tpu_custom_call.1} parent=31 // pred_check
          %p238 = pneg %p42
        $region34: #{tpu_custom_call.1} parent=31 // pred_check_branch
          %240 = sbr.rel (%p238) target = $region36
        $region35: #{tpu_custom_call.1} parent=31 // pred_region
          %s241 = sand.u32 %s32, 1
          %s242 = scalar_lea.sflag [#allocation4], %s241
          %s243 = sand.u32 %s32, 1
          %s244 = smul.addr %s243, 8
          %s245 = scalar_lea.vmem [#allocation3], %s244
          %s247 = ssub.s32 128, 128
          %248 = vsyncadd %s242, %s247
          %s249 = smul.addr %s22, 128
          %s250 = scalar_lea.hbm %s0, %s249
          %s252 = sshll.u32 %s245, 4
          %s253 = int_to_ptr.vmem [resolvable:$true] %s252
          %255 = dma.hbm_to_vmem [thread:$0]  %s250, 128, %s253, %s242
        $region36: #{tpu_custom_call.1} parent=31 // pred_fallthru
          _
      $region32: #{tpu_custom_call.1} parent=5 // pred_fallthru
        _
      %p256 = scmp.le.s32.totalorder 1, %s22
      %p257 = scmp.lt.s32.totalorder %s22, 9
      %p258 = pnand %p256, %p257
      %p259 = pneg %p258
      // Predicated region
      $region37: #{tpu_custom_call.1} parent=5 // pred_check
        _
      $region38: #{tpu_custom_call.1} parent=5 // pred_check_branch
        %261 = sbr.rel (%p258) target = $region40
      $region39: #{tpu_custom_call.1} parent=5 // pred_region
        %s262 = ssub.s32 %s22, 1
        %s263 = sand.u32 %s35, 1
        %s264 = scalar_lea.sflag [#allocation4], %s263
        %s265 = sand.u32 %s35, 1
        %s266 = smul.addr %s265, 8
        %s267 = scalar_lea.vmem [#allocation3], %s266
        // Predicated region
        $region41: #{tpu_custom_call.1} parent=39 // pred_check
          %p268 = pneg %p48
        $region42: #{tpu_custom_call.1} parent=39 // pred_check_branch
          %270 = sbr.rel (%p268) target = $region44
        $region43: #{tpu_custom_call.1} parent=39 // pred_region
          %271 = dma.done %s264, 128
        $region44: #{tpu_custom_call.1} parent=39 // pred_fallthru
          _
        // Predicated region
        $region45: #{tpu_custom_call.1} parent=39 // pred_check
          %p272 = pneg %p69
        $region46: #{tpu_custom_call.1} parent=39 // pred_check_branch
          %274 = sbr.rel (%p272) target = $region48
        $region47: #{tpu_custom_call.1} parent=39 // pred_region
          %275 = dma.done [#allocation7], 128
        $region48: #{tpu_custom_call.1} parent=39 // pred_fallthru
          _
        // Predicated region
        $region49: #{tpu_custom_call.1} parent=39 // pred_check
          %p276 = pneg %p90
        $region50: #{tpu_custom_call.1} parent=39 // pred_check_branch
          %278 = sbr.rel (%p276) target = $region52
        $region51: #{tpu_custom_call.1} parent=39 // pred_region
          %279 = dma.done [#allocation7], 256
        $region52: #{tpu_custom_call.1} parent=39 // pred_fallthru
          _
        // Predicated region
        $region53: #{tpu_custom_call.1} parent=39 // pred_check
          %p280 = pneg %p111
        $region54: #{tpu_custom_call.1} parent=39 // pred_check_branch
          %282 = sbr.rel (%p280) target = $region56
        $region55: #{tpu_custom_call.1} parent=39 // pred_region
          %283 = dma.done [#allocation10], 2048
        $region56: #{tpu_custom_call.1} parent=39 // pred_fallthru
          _
        %s284 = sand.u32 %s35, 1
        %s285 = scalar_lea.sflag [#allocation4], %s284
        %s286 = sand.u32 %s35, 1
        %s287 = smul.addr %s286, 8
        %s288 = scalar_lea.vmem [#allocation3], %s287
        %p289 = pneg %p48
        %p290 = pneg %p45
        %p291 = pneg %p69
        %p292 = pneg %p66
        %p293 = pneg %p90
        %p294 = pneg %p87
        %p295 = pneg %p111
        %p296 = pneg %p108
        %p297 = pneg %p132
        %p298 = pneg %p129
        %p299 = pneg %p158
        %p300 = pneg %p155
        %s301 = sand.u32 %s145, 1
        %s302 = scalar_lea.sflag [#allocation5], %s301
        %s303 = sand.u32 %s145, 1
        %s304 = smul.addr %s303, 8
        %s305 = scalar_lea.vmem [#allocation11], %s304
        %p306 = pneg %p179
        %p307 = pneg %p176
        %p308 = scmp.eq.s32.totalorder %s27, 0
        // Predicated region
        $region57: #{tpu_custom_call.1} parent=39 // pred_check
          %p309 = pneg %p308
        $region58: #{tpu_custom_call.1} parent=39 // pred_check_branch
          %311 = sbr.rel (%p309) target = $region60
        $region59: #{tpu_custom_call.1} parent=39 // pred_region
          %v312 = vld [vmem:[#allocation6] sm:$0xff]
          %313 = vst [vmem:[#allocation2] sm:$0xff] %v312
        $region60: #{tpu_custom_call.1} parent=39 // pred_fallthru
          _
        %v314 = vld [vmem:[%s267] sm:$0xff]
        %v315 = vld [vmem:[#allocation2] sm:$0xff]
        %v316 = vld [vmem:[#allocation8] sm:$0xff]
        %v317 = vld [vmem:[#allocation8 + $0x8] sm:$0xff]
        %v318 = vld [vmem:[#allocation9] sm:$0xff]
        %v319 = vld [vmem:[#allocation9 + $0x8] sm:$0xff]
        %v320 = vld [vmem:[#allocation9 + $0x10] sm:$0xff]
        %v321 = vld [vmem:[#allocation9 + $0x18] sm:$0xff]
        %v322 = vld [vmem:[#allocation9 + $0x20] sm:$0xff]
        %v323 = vld [vmem:[#allocation9 + $0x28] sm:$0xff]
        %v324 = vld [vmem:[#allocation9 + $0x30] sm:$0xff]
        %v325 = vld [vmem:[#allocation9 + $0x38] sm:$0xff]
        %v326 = vld [vmem:[#allocation9 + $0x40] sm:$0xff]
        %v327 = vld [vmem:[#allocation9 + $0x48] sm:$0xff]
        %v328 = vld [vmem:[#allocation9 + $0x50] sm:$0xff]
        %v329 = vld [vmem:[#allocation9 + $0x58] sm:$0xff]
        %v330 = vld [vmem:[#allocation9 + $0x60] sm:$0xff]
        %v331 = vld [vmem:[#allocation9 + $0x68] sm:$0xff]
        %v332 = vld [vmem:[#allocation9 + $0x70] sm:$0xff]
        %v333 = vld [vmem:[#allocation9 + $0x78] sm:$0xff]
        %334 = vmatprep.subr.mxu0 0.0
        %335 = vmatpush1.msra.mxu0 %v318
        %336 = vmatprep.subr.mxu0 0.0
        %337 = vmatpush1.msra.mxu0 %v319
        %338 = vmatprep.subr.mxu0 0.0
        %339 = vmatpush1.msra.mxu0 %v320
        %340 = vmatprep.subr.mxu0 0.0
        %341 = vmatpush1.msra.mxu0 %v321
        %342 = vmatprep.subr.mxu0 0.0
        %343 = vmatpush1.msra.mxu0 %v322
        %344 = vmatprep.subr.mxu0 0.0
        %345 = vmatpush1.msra.mxu0 %v323
        %346 = vmatprep.subr.mxu0 0.0
        %347 = vmatpush1.msra.mxu0 %v324
        %348 = vmatprep.subr.mxu0 0.0
        %349 = vmatpush1.msra.mxu0 %v325
        %350 = vmatprep.subr.mxu0 0.0
        %351 = vmatpush1.msra.mxu0 %v326
        %352 = vmatprep.subr.mxu0 0.0
        %353 = vmatpush1.msra.mxu0 %v327
        %354 = vmatprep.subr.mxu0 0.0
        %355 = vmatpush1.msra.mxu0 %v328
        %356 = vmatprep.subr.mxu0 0.0
        %357 = vmatpush1.msra.mxu0 %v329
        %358 = vmatprep.subr.mxu0 0.0
        %359 = vmatpush1.msra.mxu0 %v330
        %360 = vmatprep.subr.mxu0 0.0
        %361 = vmatpush1.msra.mxu0 %v331
        %362 = vmatprep.subr.mxu0 0.0
        %363 = vmatpush1.msra.mxu0 %v332
        %364 = vmatprep.subr.mxu0 0.0
        %365 = vmatpush1.msra.mxu0 %v333
        %366 = vmatprep.subr.mxu0 0.0
        %367 = vmatpush1.msra.mxu0 0.0
        %368 = vmatprep.subr.mxu0 0.0
        %369 = vmatpush1.msra.mxu0 0.0
        %370 = vmatprep.subr.mxu0 0.0
        %371 = vmatpush1.msra.mxu0 0.0
        %372 = vmatprep.subr.mxu0 0.0
        %373 = vmatpush1.msra.mxu0 0.0
        %374 = vmatprep.subr.mxu0 0.0
        %375 = vmatpush1.msra.mxu0 0.0
        %376 = vmatprep.subr.mxu0 0.0
        %377 = vmatpush1.msra.mxu0 0.0
        %378 = vmatprep.subr.mxu0 0.0
        %379 = vmatpush1.msra.mxu0 0.0
        %380 = vmatprep.subr.mxu0 0.0
        %381 = vmatpush1.msra.mxu0 0.0
        %382 = vmatprep.subr.mxu0 0.0
        %383 = vmatpush1.msra.mxu0 0.0
        %384 = vmatprep.subr.mxu0 0.0
        %385 = vmatpush1.msra.mxu0 0.0
        %386 = vmatprep.subr.mxu0 0.0
        %387 = vmatpush1.msra.mxu0 0.0
        %388 = vmatprep.subr.mxu0 0.0
        %389 = vmatpush1.msra.mxu0 0.0
        %390 = vmatprep.subr.mxu0 0.0
        %391 = vmatpush1.msra.mxu0 0.0
        %392 = vmatprep.subr.mxu0 0.0
        %393 = vmatpush1.msra.mxu0 0.0
        %394 = vmatprep.subr.mxu0 0.0
        %395 = vmatpush1.msra.mxu0 0.0
        %396 = vmatprep.subr.mxu0 0.0
        %397 = vmatpush1.msra.mxu0 0.0
        %398 = vmatprep.mubr.f32.mxu0 0.0
        %399 = vmatmul.mubr.f32.gmra.mrb[0].mxu0 %v315
        %v400 = vpop.f32.mrb[0].mxu0
        %v401 = vadd.f32 0.0, %v400
        %v402 = vpop.f32.mrb[0].mxu0
        %403 = vdwg.mxu0
        %vm404 = vcmask 130048
        %v406 = vsel %vm404, %v314, 0
        %408 = vmatprep.subr.mxu0 0.0
        %409 = vmatpush1.msra.mxu0 %v316
        %410 = vmatprep.subr.mxu0 0.0
        %411 = vmatpush1.msra.mxu0 %v317
        %412 = vmatprep.subr.mxu0 0.0
        %413 = vmatpush1.msra.mxu0 0.0
        %414 = vmatprep.subr.mxu0 0.0
        %415 = vmatpush1.msra.mxu0 0.0
        %416 = vmatprep.subr.mxu0 0.0
        %417 = vmatpush1.msra.mxu0 0.0
        %418 = vmatprep.subr.mxu0 0.0
        %419 = vmatpush1.msra.mxu0 0.0
        %420 = vmatprep.subr.mxu0 0.0
        %421 = vmatpush1.msra.mxu0 0.0
        %422 = vmatprep.subr.mxu0 0.0
        %423 = vmatpush1.msra.mxu0 0.0
        %424 = vmatprep.subr.mxu0 0.0
        %425 = vmatpush1.msra.mxu0 0.0
        %426 = vmatprep.subr.mxu0 0.0
        %427 = vmatpush1.msra.mxu0 0.0
        %428 = vmatprep.subr.mxu0 0.0
        %429 = vmatpush1.msra.mxu0 0.0
        %430 = vmatprep.subr.mxu0 0.0
        %431 = vmatpush1.msra.mxu0 0.0
        %432 = vmatprep.subr.mxu0 0.0
        %433 = vmatpush1.msra.mxu0 0.0
        %434 = vmatprep.subr.mxu0 0.0
        %435 = vmatpush1.msra.mxu0 0.0
        %436 = vmatprep.subr.mxu0 0.0
        %437 = vmatpush1.msra.mxu0 0.0
        %438 = vmatprep.subr.mxu0 0.0
        %439 = vmatpush1.msra.mxu0 0.0
        %440 = vmatprep.subr.mxu0 0.0
        %441 = vmatpush1.msra.mxu0 0.0
        %442 = vmatprep.subr.mxu0 0.0
        %443 = vmatpush1.msra.mxu0 0.0
        %444 = vmatprep.subr.mxu0 0.0
        %445 = vmatpush1.msra.mxu0 0.0
        %446 = vmatprep.subr.mxu0 0.0
        %447 = vmatpush1.msra.mxu0 0.0
        %448 = vmatprep.subr.mxu0 0.0
        %449 = vmatpush1.msra.mxu0 0.0
        %450 = vmatprep.subr.mxu0 0.0
        %451 = vmatpush1.msra.mxu0 0.0
        %452 = vmatprep.subr.mxu0 0.0
        %453 = vmatpush1.msra.mxu0 0.0
        %454 = vmatprep.subr.mxu0 0.0
        %455 = vmatpush1.msra.mxu0 0.0
        %456 = vmatprep.subr.mxu0 0.0
        %457 = vmatpush1.msra.mxu0 0.0
        %458 = vmatprep.subr.mxu0 0.0
        %459 = vmatpush1.msra.mxu0 0.0
        %460 = vmatprep.subr.mxu0 0.0
        %461 = vmatpush1.msra.mxu0 0.0
        %462 = vmatprep.subr.mxu0 0.0
        %463 = vmatpush1.msra.mxu0 0.0
        %464 = vmatprep.subr.mxu0 0.0
        %465 = vmatpush1.msra.mxu0 0.0
        %466 = vmatprep.subr.mxu0 0.0
        %467 = vmatpush1.msra.mxu0 0.0
        %468 = vmatprep.subr.mxu0 0.0
        %469 = vmatpush1.msra.mxu0 0.0
        %470 = vmatprep.subr.mxu0 0.0
        %471 = vmatpush1.msra.mxu0 0.0
        %472 = vmatprep.mubr.f32.mxu0 0.0
        %473 = vmatmul.mubr.f32.gmra.mrb[0].mxu0 %v406
        %v474 = vpop.f32.mrb[0].mxu0
        %v475 = vadd.f32 %v401, %v474
        %v476 = vpop.f32.mrb[0].mxu0
        %477 = vdwg.mxu0
        %v478 = vld [vmem:[%s4] sm:$0x1]
        %v480 = vlaneseq
        %v481 = vshrl.u32 %v480, 7
        %v482 = vsub.s32 0, %v481
        %v483 = vrot.slane %v478, %v482
        %v485 = vadd.f32 %v475, %v483
        %v486 = vlaneseq
        %v487 = vand.u32 %v486, 127
        %vm488 = vcmp.lt.s32.totalorder %v487, 32
        %vm489 = vcmp.ge.s32.totalorder %v487, 32
        %vm490 = vcmp.lt.s32.totalorder %v487, 40
        %vm491 = vmand %vm489, %vm490
        %v492 = vsel %vm488, %v485, 0.0
        %493 = vst [vmem:[#allocation2] sm:$0xff] %v492
        %v494 = vsel %vm491, %v485, -1e+30
        %495 = vmax.xlane.f32.xlu0 %v494
        %v496 = vpop.xlane.xlu0 %495
        %v497 = vsub.f32 %v494, %v496
        %v498 = vmul.f32 %v497, 1.442695
        %v499 = vpow.pop %v498
        %500 = vadd.xlane.f32.xlu0 %v499
        %v501 = vpop.xlane.xlu0 %500
        %v502 = vlog2.pop %v501
        %v503 = vmul.f32 %v502, 0.6931472
        %v504 = vadd.f32 %v496, %v503
        %v505 = vsub.f32 %v485, %v504
        %v506 = vsel %vm491, %v505, 0.0
        %507 = vst [vmem:[%s305] sm:$0xff] %v506
        %p508 = scmp.eq.s32.totalorder %s27, 7
        // Predicated region
        $region61: #{tpu_custom_call.1} parent=39 // pred_check
          %p509 = pneg %p508
        $region62: #{tpu_custom_call.1} parent=39 // pred_check_branch
          %511 = sbr.rel (%p509) target = $region64
        $region63: #{tpu_custom_call.1} parent=39 // pred_region
          %512 = vst [vmem:[#allocation12] sm:$0xff] %v492
        $region64: #{tpu_custom_call.1} parent=39 // pred_fallthru
          _
        %s513 = sand.u32 %s145, 1
        %s514 = scalar_lea.sflag [#allocation5], %s513
        %s515 = sand.u32 %s145, 1
        %s516 = smul.addr %s515, 8
        %s517 = scalar_lea.vmem [#allocation11], %s516
        // Predicated region
        $region65: #{tpu_custom_call.1} parent=39 // pred_check
          %p518 = pneg %p155
        $region66: #{tpu_custom_call.1} parent=39 // pred_check_branch
          %520 = sbr.rel (%p518) target = $region68
        $region67: #{tpu_custom_call.1} parent=39 // pred_region
          %s522 = ssub.s32 128, 128
          %523 = vsyncadd %s514, %s522
          %s524 = smul.addr %s27, 128
          %s525 = scalar_lea.hbm %s5, %s524
          %s527 = sshll.u32 %s517, 4
          %s528 = int_to_ptr.vmem [resolvable:$true] %s527
          %530 = dma.vmem_to_hbm [thread:$0]  %s528, 128, %s525, %s514
        $region68: #{tpu_custom_call.1} parent=39 // pred_fallthru
          _
        // Predicated region
        $region69: #{tpu_custom_call.1} parent=39 // pred_check
          %p531 = pneg %p176
        $region70: #{tpu_custom_call.1} parent=39 // pred_check_branch
          %533 = sbr.rel (%p531) target = $region72
        $region71: #{tpu_custom_call.1} parent=39 // pred_region
          %s535 = ssub.s32 128, 128
          %536 = vsyncadd [#allocation13], %s535
          %s538 = sshll.u32 [#allocation12], 4
          %s539 = int_to_ptr.vmem [resolvable:$true] %s538
          %541 = dma.vmem_to_hbm [thread:$0]  %s539, 128, %s6, [#allocation13]
        $region72: #{tpu_custom_call.1} parent=39 // pred_fallthru
          _
        // Predicated region
        $region73: #{tpu_custom_call.1} parent=39 // pred_check
          %p542 = pneg %p176
        $region74: #{tpu_custom_call.1} parent=39 // pred_check_branch
          %544 = sbr.rel (%p542) target = $region76
        $region75: #{tpu_custom_call.1} parent=39 // pred_region
          %545 = dma.done [#allocation13], 128
        $region76: #{tpu_custom_call.1} parent=39 // pred_fallthru
          _
      $region40: #{tpu_custom_call.1} parent=5 // pred_fallthru
        _
      %p546 = scmp.le.s32.totalorder 2, %s22
      // Predicated region
      $region77: #{tpu_custom_call.1} parent=5 // pred_check
        %p547 = pneg %p546
      $region78: #{tpu_custom_call.1} parent=5 // pred_check_branch
        %549 = sbr.rel (%p547) target = $region80
      $region79: #{tpu_custom_call.1} parent=5 // pred_region
        %s550 = ssub.s32 %s22, 2
        // Predicated region
        $region81: #{tpu_custom_call.1} parent=79 // pred_check
          %p551 = pneg %p161
        $region82: #{tpu_custom_call.1} parent=79 // pred_check_branch
          %553 = sbr.rel (%p551) target = $region84
        $region83: #{tpu_custom_call.1} parent=79 // pred_region
          %s554 = sand.u32 %s146, 1
          %s555 = scalar_lea.sflag [#allocation5], %s554
          %s556 = sand.u32 %s146, 1
          %s557 = smul.addr %s556, 8
          %s558 = scalar_lea.vmem [#allocation11], %s557
          %559 = dma.done %s555, 128
        $region84: #{tpu_custom_call.1} parent=79 // pred_fallthru
          _
      $region80: #{tpu_custom_call.1} parent=5 // pred_fallthru
        _
    $region6: #{tpu_custom_call.1} parent=1 // loop_footer
      %s26 = sadd.s32 1, %s22
    $region7: #{tpu_custom_call.1} parent=1 // loop_footer_branch
      %21 = sbr.rel target = $region3
    $region8: #{tpu_custom_call.1} parent=1 // loop_exit
      _
    %560 = vsyncpa [#allocation4], 1
    %s561 = scalar_lea.sflag [#allocation4], 1
    %562 = vsyncpa %s561, 1
    %563 = vsyncpa [#allocation7], 1
    %564 = vsyncpa [#allocation10], 1
    %565 = vsyncpa [#allocation5], 1
    %s566 = scalar_lea.sflag [#allocation5], 1
    %567 = vsyncpa %s566, 1
    %568 = vsyncpa [#allocation13], 1

</llo_original>
